<compile_context>
chip_gen: v5e
topology: v5e:2x2
jax: 0.10.0
libtpu: 0.0.40
codegen_flags: <defaults>
</compile_context>

<pallas_src>
import functools

import jax
import jax.numpy as jnp
from jax.experimental import pallas as pl
from jax.experimental.pallas import tpu as pltpu

_MIB = 1024 * 1024


def _round_up(v: int, m: int) -> int:
    return ((v + m - 1) // m) * m


def _round_down(v: int, m: int) -> int:
    return (v // m) * m


def _vmem_capacity_bytes() -> int:
    """Per-TensorCore VMEM capacity (v5e/v6e: 128 MiB, v7x: 64 MiB)."""
    try:
        info = pltpu.get_tpu_info()
        return int(getattr(info, "vmem_capacity_bytes", 64 * _MIB))
    except Exception:  # conservative (v7x-safe) fallback
        return 64 * _MIB


def _sublane_granule(itemsize: int) -> int:
    # Rows per packed sublane tile: 8 for f32, 16 for bf16, 32 for int8/fp8.
    return max(8, 32 // max(1, itemsize))


# ----------------------------------------------------------------------------- kernels


def _resident_kernel(x_ref, w_ref, b_ref, o_ref):
    """o = x + relu(x @ Wt + b) with the whole (in,out) weight resident in VMEM."""
    x = x_ref[...]                                           # (tm, D) activation tile
    h = jnp.dot(x.astype(w_ref.dtype), w_ref[...],
                preferred_element_type=jnp.float32)          # MXU, f32 accumulate
    h = jnp.maximum(h + b_ref[...].astype(jnp.float32), 0.0)
    o_ref[...] = (x.astype(jnp.float32) + h).astype(o_ref.dtype)


def _blocked_kernel(x_ref, w_ref, b_ref, o_ref, *, tn):
    """Output-column block j: o[:, j] = x[:, j] + relu(x @ Wt[:, j] + b[j]).

    x_ref is the full-width (tm, D) row tile (resident across the inner j loop);
    w_ref is a streamed (D, tn) slab of the transposed weight.
    """
    j = pl.program_id(1)
    x = x_ref[...]                                           # (tm, D)
    h = jnp.dot(x.astype(w_ref.dtype), w_ref[...],
                preferred_element_type=jnp.float32)          # (tm, tn)
    h = jnp.maximum(h + b_ref[...].astype(jnp.float32), 0.0)
    col = pl.multiple_of(j * tn, 128)
    # Residual slice taken from the already-resident x tile (tn divides the padded
    # lane width of the tile, so this never leaves the VMEM allocation).
    xr = x_ref[:, pl.ds(col, tn)]
    o_ref[...] = (xr.astype(jnp.float32) + h).astype(o_ref.dtype)


# ------------------------------------------------------------------------------- plan


def _fit_tm(avail, per_row, M, granule, cap, two_tc):
    tm = int(min(max(avail // per_row, granule), cap))
    tm = max(_round_down(tm, granule), granule)
    rows = _round_up(M, granule)
    if tm < rows:
        return tm
    # Budget allows covering all rows in one tile.
    if two_tc and rows >= 2 * granule:
        return _round_up((rows + 1) // 2, granule)           # keep >=2 steps for megacore
    return M                                                 # single full-extent tile


def _pick_tn(D, w_bytes, budget):
    """Largest multiple of 128 that divides round_up(D,128), is <=512, and whose
    double-buffered (D, tn) weight slab stays under half the VMEM budget."""
    k = _round_up(D, 128) // 128
    tn = 128
    for d in range(1, k + 1):
        cand = 128 * d
        if k % d == 0 and cand <= 512 and 2 * D * cand * w_bytes <= 0.5 * budget:
            tn = max(tn, cand)
    return tn


def _plan(M, D, act_bytes, w_bytes, budget, granule, two_tc,
          tm_override=None, tn_override=None, w_buffers=1):
    Dp = _round_up(D, 128)
    cap = 2048 if D <= 512 else 512                          # bigger row tiles at small D
    resident_w = w_buffers * (D * Dp * w_bytes + 8 * Dp * 4) # weight + f32 bias row
    blocked = (tn_override is not None) or (resident_w > 0.45 * budget)
    if not blocked:
        # 2x x-tile + 2x out-tile (double-buffered) + in-kernel temporaries
        # (operand cast to w_dtype, f32 matmul result, f32 residual cast).
        per_row = Dp * (4 * act_bytes + w_bytes + 8)
        tm = tm_override or _fit_tm(budget - resident_w, per_row, M, granule, cap, two_tc)
        return dict(blocked=False, tm=int(tm), tn=D, needed=resident_w + tm * per_row)
    tn = tn_override or _pick_tn(D, w_bytes, budget)
    assert tn % 128 == 0 and Dp % tn == 0, \
        "tn must be a multiple of 128 that divides round_up(D, 128)"
    fixed = 2 * (D * tn * w_bytes + 8 * tn * 4)              # streamed W + bias slabs (x2 bufs)
    per_row = Dp * (2 * act_bytes + w_bytes) + tn * (2 * act_bytes + 8)
    tm = tm_override or _fit_tm(budget - fixed, per_row, M, granule, cap, two_tc)
    return dict(blocked=True, tm=int(tm), tn=int(tn), needed=fixed + tm * per_row)


# ------------------------------------------------------------------------------ build


def _pallas_fn(M, D, out_dtype, plan, vmem_limit, cost, single_buffer_resident):
    tm, tn, blocked = plan["tm"], plan["tn"], plan["blocked"]
    if not blocked:
        if single_buffer_resident:
            # Resident blocks: fetched once, single-buffered (no wasted double-buffer VMEM).
            w_spec = pl.BlockSpec((D, D), lambda i: (0, 0), pipeline_mode=pl.Buffered(1))
            b_spec = pl.BlockSpec((1, D), lambda i: (0, 0), pipeline_mode=pl.Buffered(1))
        else:
            w_spec = pl.BlockSpec((D, D), lambda i: (0, 0))
            b_spec = pl.BlockSpec((1, D), lambda i: (0, 0))
        grid = (pl.cdiv(M, tm),)
        in_specs = [pl.BlockSpec((tm, D), lambda i: (i, 0)), w_spec, b_spec]
        out_specs = pl.BlockSpec((tm, D), lambda i: (i, 0))
        kernel = _resident_kernel
        dims = ("parallel",)
    else:
        # TODO(synk): on v7x, place W in pltpu.VMEM_SHARED/CMEM (or split output columns
        # across the 2 TensorCores) to avoid duplicating weight traffic per core.
        grid = (pl.cdiv(M, tm), pl.cdiv(D, tn))
        in_specs = [
            pl.BlockSpec((tm, D), lambda i, j: (i, 0)),   # x row tile: constant over j
            pl.BlockSpec((D, tn), lambda i, j: (0, j)),   # streamed weight slab (double-buffered)
            pl.BlockSpec((1, tn), lambda i, j: (0, j)),   # bias slab
        ]
        out_specs = pl.BlockSpec((tm, tn), lambda i, j: (i, j))
        kernel = functools.partial(_blocked_kernel, tn=tn)
        dims = ("parallel", "parallel")                   # column blocks are independent
    return pl.pallas_call(
        kernel,
        out_shape=jax.ShapeDtypeStruct((M, D), out_dtype),
        grid_spec=pltpu.PrefetchScalarGridSpec(
            num_scalar_prefetch=0, grid=grid, in_specs=in_specs, out_specs=out_specs),
        compiler_params=pltpu.CompilerParams(
            dimension_semantics=dims, vmem_limit_bytes=vmem_limit),
        cost_estimate=cost,
    )


def residual_linear(x, weight, bias, *, matmul_dtype=jnp.bfloat16, tm=None, tn=None,
                    vmem_budget_bytes=None):
    """y = x + relu(x @ weight^T + bias).  weight: (d, d) PyTorch-style (out, in)."""
    D = x.shape[-1]
    assert weight.shape == (D, D), "weight must be (d_int, d_int)"
    assert bias.shape == (D,), "bias must be (d_int,)"
    lead = x.shape[:-1]
    x2 = x.reshape(-1, D)
    M = x2.shape[0]

    # One-time wrapper-side transform of W: cast to the MXU operand dtype (bf16 by default)
    # and transpose to (in, out) so the kernel runs a plain LHS@RHS matmul with no
    # per-grid-step weight transposes.  Accumulation and the residual add stay f32.
    w_dtype = jnp.dtype(matmul_dtype) if matmul_dtype is not None else jnp.dtype(weight.dtype)
    wt = jnp.transpose(weight.astype(w_dtype))            # (in, out)
    b2 = bias.reshape(1, D).astype(jnp.float32)

    act_bytes = jnp.dtype(x2.dtype).itemsize
    w_bytes = w_dtype.itemsize
    granule = _sublane_granule(act_bytes)

    vmem_cap = _vmem_capacity_bytes()
    two_tc = vmem_cap <= 64 * _MIB                         # v7x-class: 64 MiB/TC, 2 TCs/chip
    budget = vmem_budget_bytes or max(vmem_cap - 16 * _MIB, vmem_cap // 2)
    limit_cap = vmem_cap - 8 * _MIB                        # never request all of VMEM

    def _run(single_buffer_resident):
        plan = _plan(M, D, act_bytes, w_bytes, budget, granule, two_tc,
                     tm_override=tm, tn_override=tn,
                     w_buffers=1 if single_buffer_resident else 2)
        vmem_limit = int(min(max(plan["needed"] + 8 * _MIB, 32 * _MIB), limit_cap))
        w_passes = 1 if not plan["blocked"] else pl.cdiv(M, plan["tm"])
        cost = pl.CostEstimate(
            flops=2 * M * D * D, transcendentals=0,
            bytes_accessed=2 * M * D * act_bytes + w_passes * D * D * w_bytes + D * 4)
        fn = _pallas_fn(M, D, x2.dtype, plan, vmem_limit, cost, single_buffer_resident)
        return fn(x2, wt, b2)

    try:
        out2 = jax.block_until_ready(_run(True))
    except Exception:
        # Fallback for jax versions without BlockSpec pipeline_mode / Buffered(1):
        # default double-buffered resident blocks with the accounting adjusted.
        out2 = _run(False)
    return out2.reshape(*lead, D)


def residual_linear_ref(x, weight, bias):
    return x + jnp.maximum(jnp.einsum("...i,oi->...o", x, weight) + bias, 0.0)


if __name__ == "__main__":
    key = jax.random.PRNGKey(0)
    kx, kw, kb = jax.random.split(key, 3)

    # Shapes consistent with ResidualLinear: x (batch, seq, d_int), weight (d_int, d_int).
    B, S, D = 2, 32, 128
    x = jax.random.normal(kx, (B, S, D), dtype=jnp.float32)
    bound = 1.0 / (D ** 0.5)
    weight = jax.random.uniform(kw, (D, D), minval=-bound, maxval=bound, dtype=jnp.float32)
    bias = jax.random.uniform(kb, (D,), minval=-bound, maxval=bound, dtype=jnp.float32)

    ref = residual_linear_ref(x, weight, bias)

    # Default path: bf16 MXU operands, f32 accumulation, resident weight.
    out = jax.block_until_ready(residual_linear(x, weight, bias))
    assert out.shape == x.shape
    assert jnp.allclose(out, ref, atol=5e-2, rtol=5e-2), "bf16 default path mismatch"

    # Opt-in f32-operand path.
    out_f32 = jax.block_until_ready(residual_linear(x, weight, bias, matmul_dtype=None))
    assert jnp.allclose(out_f32, ref, atol=2e-2, rtol=2e-2), "f32 path mismatch"

    # Exercise the N-blocked (large-D) weight-streaming path at a small size.
    D2 = 256
    xb = jax.random.normal(kx, (B, 8, D2), dtype=jnp.float32)
    wb = jax.random.uniform(kw, (D2, D2), minval=-0.05, maxval=0.05, dtype=jnp.float32)
    bb = jax.random.uniform(kb, (D2,), minval=-0.05, maxval=0.05, dtype=jnp.float32)
    out_blk = jax.block_until_ready(residual_linear(xb, wb, bb, tn=128))
    ref_blk = residual_linear_ref(xb, wb, bb)
    assert out_blk.shape == xb.shape
    assert jnp.allclose(out_blk, ref_blk, atol=5e-2, rtol=5e-2), "N-blocked path mismatch"

    print("KERNEL_OK")
</pallas_src>

<mosaic_0001>
module attributes {stable_mosaic.version = 11 : i64} {
  func.func @_resident_kernel(%arg0: i32, %arg1: memref<32x128xf32, #tpu.memory_space<vmem>>, %arg2: memref<128x128xbf16, #tpu.memory_space<vmem>>, %arg3: memref<1x128xf32, #tpu.memory_space<vmem>>, %arg4: memref<32x128xf32, #tpu.memory_space<vmem>>) attributes {dimension_semantics = [#tpu.dimension_semantics<parallel>], iteration_bounds = array<i64: 2>, scalar_prefetch = 0 : i64, scratch_operands = 0 : i64, tpu.core_type = #tpu.core_type<tc>, window_params = [{transform_indices = @transform_0, window_bounds = array<i64: 32, 128>}, {pipeline_mode = #tpu.pipeline_mode<synchronous>, transform_indices = @transform_1, window_bounds = array<i64: 128, 128>}, {pipeline_mode = #tpu.pipeline_mode<synchronous>, transform_indices = @transform_2, window_bounds = array<i64: 1, 128>}, {transform_indices = @transform_3, window_bounds = array<i64: 32, 128>}]} {
    %c0 = arith.constant 0 : index
    %c0_0 = arith.constant 0 : index
    %0 = vector.load %arg1[%c0, %c0_0] : memref<32x128xf32, #tpu.memory_space<vmem>>, vector<32x128xf32>
    %1 = arith.truncf %0 : vector<32x128xf32> to vector<32x128xbf16>
    %c0_1 = arith.constant 0 : index
    %c0_2 = arith.constant 0 : index
    %2 = vector.load %arg2[%c0_1, %c0_2] : memref<128x128xbf16, #tpu.memory_space<vmem>>, vector<128x128xbf16>
    %cst = arith.constant dense<0.000000e+00> : vector<32x128xf32>
    %3 = tpu.matmul %1, %2, %cst {dimension_numbers = #tpu.dot_dimension_numbers<[1], [0], [0], [1], [0, 0, 1, 1], [], []>} : vector<32x128xbf16>, vector<128x128xbf16>, vector<32x128xf32> -> vector<32x128xf32>
    %c0_3 = arith.constant 0 : index
    %c0_4 = arith.constant 0 : index
    %4 = vector.load %arg3[%c0_3, %c0_4] : memref<1x128xf32, #tpu.memory_space<vmem>>, vector<1x128xf32>
    %5 = vector.broadcast %4 : vector<1x128xf32> to vector<32x128xf32>
    %6 = arith.addf %3, %5 : vector<32x128xf32>
    %cst_5 = arith.constant 0.000000e+00 : f32
    %7 = vector.broadcast %cst_5 : f32 to vector<32x128xf32>
    %8 = arith.maximumf %6, %7 : vector<32x128xf32>
    %9 = arith.addf %0, %8 : vector<32x128xf32>
    %c0_6 = arith.constant 0 : index
    %c0_7 = arith.constant 0 : index
    %10 = vector.load %arg4[%c0_6, %c0_7] : memref<32x128xf32, #tpu.memory_space<vmem>>, vector<32x128xf32>
    tpu.vector_store %arg4[%c0_6, %c0_7], %9 {strides = array<i32>} : memref<32x128xf32, #tpu.memory_space<vmem>>, vector<32x128xf32>,
    return
  }
  func.func @transform_0(%arg0: i32) -> (i32, i32) {
    %c0_i32 = arith.constant 0 : i32
    %c0_i32_0 = arith.constant 0 : i32
    return %arg0, %c0_i32 : i32, i32
  }
  func.func @transform_1(%arg0: i32) -> (i32, i32) {
    %c0_i32 = arith.constant 0 : i32
    %c0_i32_0 = arith.constant 0 : i32
    %c0_i32_1 = arith.constant 0 : i32
    return %c0_i32, %c0_i32_0 : i32, i32
  }
  func.func @transform_2(%arg0: i32) -> (i32, i32) {
    %c0_i32 = arith.constant 0 : i32
    %c0_i32_0 = arith.constant 0 : i32
    %c0_i32_1 = arith.constant 0 : i32
    return %c0_i32, %c0_i32_0 : i32, i32
  }
  func.func @transform_3(%arg0: i32) -> (i32, i32) {
    %c0_i32 = arith.constant 0 : i32
    %c0_i32_0 = arith.constant 0 : i32
    return %arg0, %c0_i32 : i32, i32
  }
}

module attributes {stable_mosaic.version = 11 : i64} {
  func.func @_resident_kernel(%arg0: i32, %arg1: memref<32x128xf32, #tpu.memory_space<vmem>>, %arg2: memref<128x128xbf16, #tpu.memory_space<vmem>>, %arg3: memref<1x128xf32, #tpu.memory_space<vmem>>, %arg4: memref<32x128xf32, #tpu.memory_space<vmem>>) attributes {dimension_semantics = [#tpu.dimension_semantics<parallel>], iteration_bounds = array<i64: 2>, scalar_prefetch = 0 : i64, scratch_operands = 0 : i64, tpu.core_type = #tpu.core_type<tc>, window_params = [{transform_indices = @transform_0, window_bounds = array<i64: 32, 128>}, {pipeline_mode = #tpu.pipeline_mode<synchronous>, transform_indices = @transform_1, window_bounds = array<i64: 128, 128>}, {pipeline_mode = #tpu.pipeline_mode<synchronous>, transform_indices = @transform_2, window_bounds = array<i64: 1, 128>}, {transform_indices = @transform_3, window_bounds = array<i64: 32, 128>}]} {
    %c0 = arith.constant 0 : index
    %c0_0 = arith.constant 0 : index
    %0 = vector.load %arg1[%c0, %c0_0] : memref<32x128xf32, #tpu.memory_space<vmem>>, vector<32x128xf32>
    %1 = arith.truncf %0 : vector<32x128xf32> to vector<32x128xbf16>
    %c0_1 = arith.constant 0 : index
    %c0_2 = arith.constant 0 : index
    %2 = vector.load %arg2[%c0_1, %c0_2] : memref<128x128xbf16, #tpu.memory_space<vmem>>, vector<128x128xbf16>
    %cst = arith.constant dense<0.000000e+00> : vector<32x128xf32>
    %3 = tpu.matmul %1, %2, %cst {dimension_numbers = #tpu.dot_dimension_numbers<[1], [0], [0], [1], [0, 0, 1, 1], [], []>} : vector<32x128xbf16>, vector<128x128xbf16>, vector<32x128xf32> -> vector<32x128xf32>
    %c0_3 = arith.constant 0 : index
    %c0_4 = arith.constant 0 : index
    %4 = vector.load %arg3[%c0_3, %c0_4] : memref<1x128xf32, #tpu.memory_space<vmem>>, vector<1x128xf32>
    %5 = vector.broadcast %4 : vector<1x128xf32> to vector<32x128xf32>
    %6 = arith.addf %3, %5 : vector<32x128xf32>
    %cst_5 = arith.constant 0.000000e+00 : f32
    %7 = vector.broadcast %cst_5 : f32 to vector<32x128xf32>
    %8 = arith.maximumf %6, %7 : vector<32x128xf32>
    %9 = arith.addf %0, %8 : vector<32x128xf32>
    %c0_6 = arith.constant 0 : index
    %c0_7 = arith.constant 0 : index
    %10 = vector.load %arg4[%c0_6, %c0_7] : memref<32x128xf32, #tpu.memory_space<vmem>>, vector<32x128xf32>
    tpu.vector_store %arg4[%c0_6, %c0_7], %9 {strides = array<i32>} : memref<32x128xf32, #tpu.memory_space<vmem>>, vector<32x128xf32>,
    return
  }
  func.func @transform_0(%arg0: i32) -> (i32, i32) {
    %c0_i32 = arith.constant 0 : i32
    %c0_i32_0 = arith.constant 0 : i32
    return %arg0, %c0_i32 : i32, i32
  }
  func.func @transform_1(%arg0: i32) -> (i32, i32) {
    %c0_i32 = arith.constant 0 : i32
    %c0_i32_0 = arith.constant 0 : i32
    %c0_i32_1 = arith.constant 0 : i32
    return %c0_i32, %c0_i32_0 : i32, i32
  }
  func.func @transform_2(%arg0: i32) -> (i32, i32) {
    %c0_i32 = arith.constant 0 : i32
    %c0_i32_0 = arith.constant 0 : i32
    %c0_i32_1 = arith.constant 0 : i32
    return %c0_i32, %c0_i32_0 : i32, i32
  }
  func.func @transform_3(%arg0: i32) -> (i32, i32) {
    %c0_i32 = arith.constant 0 : i32
    %c0_i32_0 = arith.constant 0 : i32
    return %arg0, %c0_i32 : i32, i32
  }
}

</mosaic_0001>

<llo_original>
// kernel: tpu_custom_call.1
$region0: #{tpu_custom_call.1}
  #allocation0 [shape = 'u32[]', space=smem, size = 0x4, offset = 0x4, fixed_abs, tag = 'smem constant byte address 0x4 - core index']
  #allocation1 [shape = 'u32[72,128]{1,0:T(1,128)}', space=vmem, size = 0x9000, scoped, tag = 'internal scratch']
  %s0 = inlined_call_operand.hbm [shape: f32[64,128], index: 0, kind: input, shape index: {}]
  %s1 = inlined_call_operand.hbm [shape: bf16[128,128], index: 1, kind: input, shape index: {}]
  %s2 = inlined_call_operand.vmem [shape: f32[1,128], index: 2, kind: input, shape index: {}]
  %s3 = inlined_call_operand.hbm [shape: f32[64,128], index: 3, kind: output, shape index: {}]
  %s4 = sld [smem:[#allocation0]]
  $region53: #{tpu_custom_call.1} parent=0
    _
  %s6 = ssub.s32 1, %s4
  %s7 = scalar_select 0, %s6, %s4
  $region1: #{tpu_custom_call.1} parent=0
    #allocation2 [shape = 'u8[32768]{0}', space=vmem, size = 0x8000, scoped, tag = 'input window, operand 0']
    #allocation3 [shape = 's32[2]{0}', space=sflag, size = 0x8, scoped, tag = 'scoped memory for tpu_custom_call.1']
    #allocation4 [shape = 's32[2]{0}', space=sflag, size = 0x8, scoped, tag = 'scoped memory for tpu_custom_call.1']
    #allocation5 [shape = 'u8[32768]{0}', space=vmem, size = 0x8000, scoped, tag = 'input window, operand 1, single buffered']
    #allocation6 [shape = 's32[1]{0}', space=sflag, size = 0x4, scoped, tag = 'scoped memory for tpu_custom_call.1']
    #allocation7 [shape = 'u8[32768]{0}', space=vmem, size = 0x8000, scoped, tag = 'output window, operand 0']
    %8 = vsyncpa [#allocation3], 0
    %s9 = scalar_lea.sflag [#allocation3], 1
    %10 = vsyncpa %s9, 0
    %11 = vsyncpa [#allocation6], 0
    %12 = vsyncpa [#allocation4], 0
    %s13 = scalar_lea.sflag [#allocation4], 1
    %14 = vsyncpa %s13, 0
    loop: start=0, step=1, limit=4
    $region2: #{tpu_custom_call.1} parent=1 // loop_pre_header
      _
    $region3: #{tpu_custom_call.1} parent=1 // loop_header
      %s16 = sphi 0, %s20
      %p17 = scmp.ge.s32.totalorder %s16, 4
      %s26 = sphi 0, %s28
      %s29 = sphi 0, %s26
      %s30 = sphi 0, %s29
      %s46 = sphi 0, %s30
      %s50 = sphi 0, %s50
      %s52 = sphi 0, %s50
      %s53 = sphi 0, %s52
      %s67 = sphi 0, %s53
      %s71 = sphi 0, %s71
      %s73 = sphi 0, %s71
      %s74 = sphi 0, %s73
      %s88 = sphi 0, %s74
      %s94 = sphi 0, %s96
      %s97 = sphi 0, %s94
      %s98 = sphi 0, %s97
      %s114 = sphi 0, %s98
    $region4: #{tpu_custom_call.1} parent=1 // loop_header_branch
      %19 = sbr.rel (%p17) target = $region8
    $region5: #{tpu_custom_call.1} parent=1 // loop_body
      %s21 = ssub.s32 %s16, 1
      %s22 = ssub.s32 %s16, 2
      %s23 = sadd.s32 %s16, 1
      %s24 = ssub.s32 %s16, %s23
      %p25 = scmp.eq.s32.totalorder %s24, 0
      %s27 = sadd.s32 %s26, 1
      %s28 = scalar_select %p25, %s26, %s27
      %p31 = pneg %p25
      %p32 = scmp.eq.s32.totalorder %s16, 1
      %p33 = por %p31, %p32
      %p34 = scmp.ne.s32.totalorder %s26, %s29
      %p35 = scmp.eq.s32.totalorder %s16, 0
      %p36 = por %p34, %p35
      %p37 = scmp.ne.s32.totalorder %s26, %s29
      %p38 = scmp.eq.s32.totalorder %s21, 1
      %p39 = por %p37, %p38
      %p40 = scmp.ne.s32.totalorder %s29, %s30
      %p41 = scmp.eq.s32.totalorder %s21, 0
      %p42 = por %p40, %p41
      %p43 = scmp.ne.s32.totalorder %s29, %s30
      %p44 = scmp.eq.s32.totalorder %s22, 1
      %p45 = por %p43, %p44
      %p47 = scmp.ne.s32.totalorder %s30, %s46
      %p48 = scmp.eq.s32.totalorder %s22, 0
      %p49 = por %p47, %p48
      %s51 = sadd.s32 %s50, 1
      %p54 = scmp.eq.s32.totalorder %s16, 1
      %p55 = scmp.ne.s32.totalorder %s50, %s52
      %p56 = scmp.eq.s32.totalorder %s16, 0
      %p57 = por %p55, %p56
      %p58 = scmp.ne.s32.totalorder %s50, %s52
      %p59 = scmp.eq.s32.totalorder %s21, 1
      %p60 = por %p58, %p59
      %p61 = scmp.ne.s32.totalorder %s52, %s53
      %p62 = scmp.eq.s32.totalorder %s21, 0
      %p63 = por %p61, %p62
      %p64 = scmp.ne.s32.totalorder %s52, %s53
      %p65 = scmp.eq.s32.totalorder %s22, 1
      %p66 = por %p64, %p65
      %p68 = scmp.ne.s32.totalorder %s53, %s67
      %p69 = scmp.eq.s32.totalorder %s22, 0
      %p70 = por %p68, %p69
      %s72 = sadd.s32 %s71, 1
      %p75 = scmp.eq.s32.totalorder %s16, 1
      %p76 = scmp.ne.s32.totalorder %s71, %s73
      %p77 = scmp.eq.s32.totalorder %s16, 0
      %p78 = por %p76, %p77
      %p79 = scmp.ne.s32.totalorder %s71, %s73
      %p80 = scmp.eq.s32.totalorder %s21, 1
      %p81 = por %p79, %p80
      %p82 = scmp.ne.s32.totalorder %s73, %s74
      %p83 = scmp.eq.s32.totalorder %s21, 0
      %p84 = por %p82, %p83
      %p85 = scmp.ne.s32.totalorder %s73, %s74
      %p86 = scmp.eq.s32.totalorder %s22, 1
      %p87 = por %p85, %p86
      %p89 = scmp.ne.s32.totalorder %s74, %s88
      %p90 = scmp.eq.s32.totalorder %s22, 0
      %p91 = por %p89, %p90
      %s92 = ssub.s32 %s16, %s23
      %p93 = scmp.eq.s32.totalorder %s92, 0
      %s95 = sadd.s32 %s94, 1
      %s96 = scalar_select %p93, %s94, %s95
      %p99 = pneg %p93
      %p100 = scmp.eq.s32.totalorder %s16, 1
      %p101 = por %p99, %p100
      %p102 = scmp.ne.s32.totalorder %s94, %s97
      %p103 = scmp.eq.s32.totalorder %s16, 0
      %p104 = por %p102, %p103
      %p105 = scmp.ne.s32.totalorder %s94, %s97
      %p106 = scmp.eq.s32.totalorder %s21, 1
      %p107 = por %p105, %p106
      %p108 = scmp.ne.s32.totalorder %s97, %s98
      %p109 = scmp.eq.s32.totalorder %s21, 0
      %p110 = por %p108, %p109
      %p111 = scmp.ne.s32.totalorder %s97, %s98
      %p112 = scmp.eq.s32.totalorder %s22, 1
      %p113 = por %p111, %p112
      %p115 = scmp.ne.s32.totalorder %s98, %s114
      %p116 = scmp.eq.s32.totalorder %s22, 0
      %p117 = por %p115, %p116
      %p118 = scmp.le.s32.totalorder 1, %s16
      %p119 = scmp.lt.s32.totalorder %s16, 3
      %p120 = pnand %p118, %p119
      %p121 = pneg %p120
      // Predicated region
      $region9: #{tpu_custom_call.1} parent=5 // pred_check
        _
      $region10: #{tpu_custom_call.1} parent=5 // pred_check_branch
        %123 = sbr.rel (%p120) target = $region12
      $region11: #{tpu_custom_call.1} parent=5 // pred_region
        %s124 = ssub.s32 %s16, 1
        // Predicated region
        $region13: #{tpu_custom_call.1} parent=11 // pred_check
          %p125 = pneg %p63
        $region14: #{tpu_custom_call.1} parent=11 // pred_check_branch
          %127 = sbr.rel (%p125) target = $region16
        $region15: #{tpu_custom_call.1} parent=11 // pred_region
          %129 = vsyncadd [#allocation6], 0
          %s130 = sshll.u32 %s1, 4
          %s131 = int_to_ptr.hbm [resolvable:$true] %s130
          %s132 = sshll.u32 [#allocation5], 4
          %s133 = int_to_ptr.vmem [resolvable:$true] %s132
          %138 = dma.hbm_to_vmem [thread:$0]  %s131, 1024, %s133, [#allocation6], 64, 64, 4
        $region16: #{tpu_custom_call.1} parent=11 // pred_fallthru
          _
        // Predicated region
        $region17: #{tpu_custom_call.1} parent=11 // pred_check
          %p139 = pneg %p84
        $region18: #{tpu_custom_call.1} parent=11 // pred_check_branch
          %141 = sbr.rel (%p139) target = $region20
        $region19: #{tpu_custom_call.1} parent=11 // pred_region
          _
        $region20: #{tpu_custom_call.1} parent=11 // pred_fallthru
          _
      $region12: #{tpu_custom_call.1} parent=5 // pred_fallthru
        _
      %p142 = scmp.lt.s32.totalorder %s16, 2
      // Predicated region
      $region21: #{tpu_custom_call.1} parent=5 // pred_check
        %p143 = pneg %p142
      $region22: #{tpu_custom_call.1} parent=5 // pred_check_branch
        %145 = sbr.rel (%p143) target = $region24
      $region23: #{tpu_custom_call.1} parent=5 // pred_region
        // Predicated region
        $region25: #{tpu_custom_call.1} parent=23 // pred_check
          %p146 = pneg %p36
        $region26: #{tpu_custom_call.1} parent=23 // pred_check_branch
          %148 = sbr.rel (%p146) target = $region28
        $region27: #{tpu_custom_call.1} parent=23 // pred_region
          %s149 = sand.u32 %s26, 1
          %s150 = scalar_lea.sflag [#allocation3], %s149
          %s151 = sand.u32 %s26, 1
          %s152 = smul.addr %s151, 32
          %s153 = scalar_lea.vmem [#allocation2], %s152
          %s154 = smul.u32 4, %s16
          %156 = vsyncadd %s150, 0
          %s157 = smul.addr %s154, 8
          %s158 = scalar_lea.hbm %s0, %s157
          %s159 = sshll.u32 %s158, 4
          %s160 = int_to_ptr.hbm [resolvable:$true] %s159
          %s161 = sshll.u32 %s153, 4
          %s162 = int_to_ptr.vmem [resolvable:$true] %s161
          %167 = dma.hbm_to_vmem [thread:$0]  %s160, 512, %s162, %s150, 128, 128, 8
        $region28: #{tpu_custom_call.1} parent=23 // pred_fallthru
          _
      $region24: #{tpu_custom_call.1} parent=5 // pred_fallthru
        _
      %p168 = scmp.le.s32.totalorder 1, %s16
      %p169 = scmp.lt.s32.totalorder %s16, 3
      %p170 = pnand %p168, %p169
      %p171 = pneg %p170
      // Predicated region
      $region29: #{tpu_custom_call.1} parent=5 // pred_check
        _
      $region30: #{tpu_custom_call.1} parent=5 // pred_check_branch
        %173 = sbr.rel (%p170) target = $region32
      $region31: #{tpu_custom_call.1} parent=5 // pred_region
        %s174 = ssub.s32 %s16, 1
        %s175 = sand.u32 %s29, 1
        %s176 = scalar_lea.sflag [#allocation3], %s175
        %s177 = sand.u32 %s29, 1
        %s178 = smul.addr %s177, 32
        %s179 = scalar_lea.vmem [#allocation2], %s178
        // Predicated region
        $region33: #{tpu_custom_call.1} parent=31 // pred_check
          %p180 = pneg %p42
        $region34: #{tpu_custom_call.1} parent=31 // pred_check_branch
          %182 = sbr.rel (%p180) target = $region36
        $region35: #{tpu_custom_call.1} parent=31 // pred_region
          %184 = dma.done %s176, 512
        $region36: #{tpu_custom_call.1} parent=31 // pred_fallthru
          _
        // Predicated region
        $region37: #{tpu_custom_call.1} parent=31 // pred_check
          %p185 = pneg %p63
        $region38: #{tpu_custom_call.1} parent=31 // pred_check_branch
          %187 = sbr.rel (%p185) target = $region40
        $region39: #{tpu_custom_call.1} parent=31 // pred_region
          %189 = dma.done [#allocation6], 1024
        $region40: #{tpu_custom_call.1} parent=31 // pred_fallthru
          _
        %s190 = sand.u32 %s29, 1
        %s191 = scalar_lea.sflag [#allocation3], %s190
        %s192 = sand.u32 %s29, 1
        %s193 = smul.addr %s192, 32
        %s194 = scalar_lea.vmem [#allocation2], %s193
        %p195 = pneg %p42
        %p196 = pneg %p39
        %p197 = pneg %p63
        %p198 = pneg %p60
        %p199 = pneg %p84
        %p200 = pneg %p81
        %p201 = pneg %p110
        %p202 = pneg %p107
        %s203 = sand.u32 %s97, 1
        %s204 = scalar_lea.sflag [#allocation4], %s203
        %s205 = sand.u32 %s97, 1
        %s206 = smul.addr %s205, 32
        %s207 = scalar_lea.vmem [#allocation7], %s206
        %s208 = smul.u32 4, %s21
        %s209 = smul.u32 4, %s21
        %v210 = vld [vmem:[%s179] sm:$0xff]
        %v211 = vld [vmem:[%s179 + $0x8] sm:$0xff]
        %v212 = vld [vmem:[%s179 + $0x10] sm:$0xff]
        %v213 = vld [vmem:[%s179 + $0x18] sm:$0xff]
        %v214 = vpack.c.bf16 %v211, %v210
        %v215 = vpack.c.bf16 %v213, %v212
        %v216 = vld [vmem:[#allocation5] sm:$0xf]
        %v217 = vld [vmem:[#allocation5 + $0x4] sm:$0xf]
        %v218 = vld [vmem:[#allocation5 + $0x8] sm:$0xf]
        %v219 = vld [vmem:[#allocation5 + $0xc] sm:$0xf]
        %v220 = vld [vmem:[#allocation5 + $0x10] sm:$0xf]
        %v221 = vld [vmem:[#allocation5 + $0x14] sm:$0xf]
        %v222 = vld [vmem:[#allocation5 + $0x18] sm:$0xf]
        %v223 = vld [vmem:[#allocation5 + $0x1c] sm:$0xf]
        %v224 = vld [vmem:[#allocation5 + $0x20] sm:$0xf]
        %v225 = vld [vmem:[#allocation5 + $0x24] sm:$0xf]
        %v226 = vld [vmem:[#allocation5 + $0x28] sm:$0xf]
        %v227 = vld [vmem:[#allocation5 + $0x2c] sm:$0xf]
        %v228 = vld [vmem:[#allocation5 + $0x30] sm:$0xf]
        %v229 = vld [vmem:[#allocation5 + $0x34] sm:$0xf]
        %v230 = vld [vmem:[#allocation5 + $0x38] sm:$0xf]
        %v231 = vld [vmem:[#allocation5 + $0x3c] sm:$0xf]
        %v232 = vld [vmem:[%s2] sm:$0x1]
        %v234 = vperm.slane %v232, 0
        %v252 = vunpack.c.l.b16 %v216
        %v253 = vunpack.c.l.b16 %v217
        %v254 = vunpack.c.l.b16 %v218
        %v255 = vunpack.c.l.b16 %v219
        %v256 = vunpack.c.l.b16 %v220
        %v257 = vunpack.c.l.b16 %v221
        %v258 = vunpack.c.l.b16 %v222
        %v259 = vunpack.c.l.b16 %v223
        %v260 = vunpack.c.l.b16 %v224
        %v261 = vunpack.c.l.b16 %v225
        %v262 = vunpack.c.l.b16 %v226
        %v263 = vunpack.c.l.b16 %v227
        %v264 = vunpack.c.l.b16 %v228
        %v265 = vunpack.c.l.b16 %v229
        %v266 = vunpack.c.l.b16 %v230
        %v267 = vunpack.c.l.b16 %v231
        %v268 = vpack.c.b16 %v253, %v252
        %v269 = vpack.c.b16 %v255, %v254
        %v270 = vpack.c.b16 %v257, %v256
        %v271 = vpack.c.b16 %v259, %v258
        %v272 = vpack.c.b16 %v261, %v260
        %v273 = vpack.c.b16 %v263, %v262
        %v274 = vpack.c.b16 %v265, %v264
        %v275 = vpack.c.b16 %v267, %v266
        %284 = vmatpush.bf16.msra.mxu0 %v275
        %285 = vmatpush.bf16.msra.mxu0 %v274
        %286 = vmatpush.bf16.msra.mxu0 %v273
        %287 = vmatpush.bf16.msra.mxu0 %v272
        %288 = vmatpush.bf16.msra.mxu0 %v271
        %289 = vmatpush.bf16.msra.mxu0 %v270
        %290 = vmatpush.bf16.msra.mxu0 %v269
        %291 = vmatpush.bf16.msra.mxu0 %v268
        %292 = vmatmul.bf16.gmra.mxu0 %v214
        %v293 = vpop.f32.mrf.mxu0
        %v294 = vadd.f32 %v234, %v293
        %v295 = vpop.f32.mrf.mxu0
        %v296 = vadd.f32 %v234, %v295
        %297 = vmatmul.bf16.gmra.mxu0 %v215
        %v298 = vpop.f32.mrf.mxu0
        %v299 = vadd.f32 %v234, %v298
        %v300 = vpop.f32.mrf.mxu0
        %v301 = vadd.f32 %v234, %v300
        %302 = vdwg.mxu0
        %v303 = vmax.f32 %v294, 0.0
        %v304 = vmax.f32 %v296, 0.0
        %v305 = vmax.f32 %v299, 0.0
        %v306 = vmax.f32 %v301, 0.0
        %v307 = vadd.f32 %v210, %v303
        %v308 = vadd.f32 %v211, %v304
        %v309 = vadd.f32 %v212, %v305
        %v310 = vadd.f32 %v213, %v306
        %311 = vst [vmem:[%s207] sm:$0xff] %v307
        %312 = vst [vmem:[%s207 + $0x8] sm:$0xff] %v308
        %313 = vst [vmem:[%s207 + $0x10] sm:$0xff] %v309
        %314 = vst [vmem:[%s207 + $0x18] sm:$0xff] %v310
        %s315 = sand.u32 %s97, 1
        %s316 = scalar_lea.sflag [#allocation4], %s315
        %s317 = sand.u32 %s97, 1
        %s318 = smul.addr %s317, 32
        %s319 = scalar_lea.vmem [#allocation7], %s318
        // Predicated region
        $region41: #{tpu_custom_call.1} parent=31 // pred_check
          %p320 = pneg %p107
        $region42: #{tpu_custom_call.1} parent=31 // pred_check_branch
          %322 = sbr.rel (%p320) target = $region44
        $region43: #{tpu_custom_call.1} parent=31 // pred_region
          %s323 = smul.u32 4, %s21
          %325 = vsyncadd %s316, 0
          %s326 = smul.addr %s323, 8
          %s327 = scalar_lea.hbm %s3, %s326
          %s328 = sshll.u32 %s319, 4
          %s329 = int_to_ptr.vmem [resolvable:$true] %s328
          %s330 = sshll.u32 %s327, 4
          %s331 = int_to_ptr.hbm [resolvable:$true] %s330
          %336 = dma.vmem_to_hbm [thread:$0]  %s329, 512, %s331, %s316, 128, 128, 8
        $region44: #{tpu_custom_call.1} parent=31 // pred_fallthru
          _
      $region32: #{tpu_custom_call.1} parent=5 // pred_fallthru
        _
      %p337 = scmp.le.s32.totalorder 2, %s16
      // Predicated region
      $region45: #{tpu_custom_call.1} parent=5 // pred_check
        %p338 = pneg %p337
      $region46: #{tpu_custom_call.1} parent=5 // pred_check_branch
        %340 = sbr.rel (%p338) target = $region48
      $region47: #{tpu_custom_call.1} parent=5 // pred_region
        %s341 = ssub.s32 %s16, 2
        // Predicated region
        $region49: #{tpu_custom_call.1} parent=47 // pred_check
          %p342 = pneg %p113
        $region50: #{tpu_custom_call.1} parent=47 // pred_check_branch
          %344 = sbr.rel (%p342) target = $region52
        $region51: #{tpu_custom_call.1} parent=47 // pred_region
          %s345 = sand.u32 %s98, 1
          %s346 = scalar_lea.sflag [#allocation4], %s345
          %s347 = sand.u32 %s98, 1
          %s348 = smul.addr %s347, 32
          %s349 = scalar_lea.vmem [#allocation7], %s348
          %351 = dma.done %s346, 512
        $region52: #{tpu_custom_call.1} parent=47 // pred_fallthru
          _
      $region48: #{tpu_custom_call.1} parent=5 // pred_fallthru
        _
    $region6: #{tpu_custom_call.1} parent=1 // loop_footer
      %s20 = sadd.s32 1, %s16
    $region7: #{tpu_custom_call.1} parent=1 // loop_footer_branch
      %15 = sbr.rel target = $region3
    $region8: #{tpu_custom_call.1} parent=1 // loop_exit
      _
    %352 = vsyncpa [#allocation3], 1
    %s353 = scalar_lea.sflag [#allocation3], 1
    %354 = vsyncpa %s353, 1
    %355 = vsyncpa [#allocation6], 1
    %356 = vsyncpa [#allocation4], 1
    %s357 = scalar_lea.sflag [#allocation4], 1
    %358 = vsyncpa %s357, 1

// kernel: tpu_custom_call.1
$region0: #{tpu_custom_call.1}
  #allocation0 [shape = 'u32[]', space=smem, size = 0x4, offset = 0x4, fixed_abs, tag = 'smem constant byte address 0x4 - core index']
  #allocation1 [shape = 'u32[72,128]{1,0:T(1,128)}', space=vmem, size = 0x9000, scoped, tag = 'internal scratch']
  %s0 = inlined_call_operand.hbm [shape: f32[64,128], index: 0, kind: input, shape index: {}]
  %s1 = inlined_call_operand.hbm [shape: bf16[128,128], index: 1, kind: input, shape index: {}]
  %s2 = inlined_call_operand.vmem [shape: f32[1,128], index: 2, kind: input, shape index: {}]
  %s3 = inlined_call_operand.hbm [shape: f32[64,128], index: 3, kind: output, shape index: {}]
  %s4 = sld [smem:[#allocation0]]
  $region53: #{tpu_custom_call.1} parent=0
    _
  %s6 = ssub.s32 1, %s4
  %s7 = scalar_select 0, %s6, %s4
  $region1: #{tpu_custom_call.1} parent=0
    #allocation2 [shape = 'u8[32768]{0}', space=vmem, size = 0x8000, scoped, tag = 'input window, operand 0']
    #allocation3 [shape = 's32[2]{0}', space=sflag, size = 0x8, scoped, tag = 'scoped memory for tpu_custom_call.1']
    #allocation4 [shape = 's32[2]{0}', space=sflag, size = 0x8, scoped, tag = 'scoped memory for tpu_custom_call.1']
    #allocation5 [shape = 'u8[32768]{0}', space=vmem, size = 0x8000, scoped, tag = 'input window, operand 1, single buffered']
    #allocation6 [shape = 's32[1]{0}', space=sflag, size = 0x4, scoped, tag = 'scoped memory for tpu_custom_call.1']
    #allocation7 [shape = 'u8[32768]{0}', space=vmem, size = 0x8000, scoped, tag = 'output window, operand 0']
    %8 = vsyncpa [#allocation3], 0
    %s9 = scalar_lea.sflag [#allocation3], 1
    %10 = vsyncpa %s9, 0
    %11 = vsyncpa [#allocation6], 0
    %12 = vsyncpa [#allocation4], 0
    %s13 = scalar_lea.sflag [#allocation4], 1
    %14 = vsyncpa %s13, 0
    loop: start=0, step=1, limit=4
    $region2: #{tpu_custom_call.1} parent=1 // loop_pre_header
      _
    $region3: #{tpu_custom_call.1} parent=1 // loop_header
      %s16 = sphi 0, %s20
      %p17 = scmp.ge.s32.totalorder %s16, 4
      %s26 = sphi 0, %s28
      %s29 = sphi 0, %s26
      %s30 = sphi 0, %s29
      %s46 = sphi 0, %s30
      %s50 = sphi 0, %s50
      %s52 = sphi 0, %s50
      %s53 = sphi 0, %s52
      %s67 = sphi 0, %s53
      %s71 = sphi 0, %s71
      %s73 = sphi 0, %s71
      %s74 = sphi 0, %s73
      %s88 = sphi 0, %s74
      %s94 = sphi 0, %s96
      %s97 = sphi 0, %s94
      %s98 = sphi 0, %s97
      %s114 = sphi 0, %s98
    $region4: #{tpu_custom_call.1} parent=1 // loop_header_branch
      %19 = sbr.rel (%p17) target = $region8
    $region5: #{tpu_custom_call.1} parent=1 // loop_body
      %s21 = ssub.s32 %s16, 1
      %s22 = ssub.s32 %s16, 2
      %s23 = sadd.s32 %s16, 1
      %s24 = ssub.s32 %s16, %s23
      %p25 = scmp.eq.s32.totalorder %s24, 0
      %s27 = sadd.s32 %s26, 1
      %s28 = scalar_select %p25, %s26, %s27
      %p31 = pneg %p25
      %p32 = scmp.eq.s32.totalorder %s16, 1
      %p33 = por %p31, %p32
      %p34 = scmp.ne.s32.totalorder %s26, %s29
      %p35 = scmp.eq.s32.totalorder %s16, 0
      %p36 = por %p34, %p35
      %p37 = scmp.ne.s32.totalorder %s26, %s29
      %p38 = scmp.eq.s32.totalorder %s21, 1
      %p39 = por %p37, %p38
      %p40 = scmp.ne.s32.totalorder %s29, %s30
      %p41 = scmp.eq.s32.totalorder %s21, 0
      %p42 = por %p40, %p41
      %p43 = scmp.ne.s32.totalorder %s29, %s30
      %p44 = scmp.eq.s32.totalorder %s22, 1
      %p45 = por %p43, %p44
      %p47 = scmp.ne.s32.totalorder %s30, %s46
      %p48 = scmp.eq.s32.totalorder %s22, 0
      %p49 = por %p47, %p48
      %s51 = sadd.s32 %s50, 1
      %p54 = scmp.eq.s32.totalorder %s16, 1
      %p55 = scmp.ne.s32.totalorder %s50, %s52
      %p56 = scmp.eq.s32.totalorder %s16, 0
      %p57 = por %p55, %p56
      %p58 = scmp.ne.s32.totalorder %s50, %s52
      %p59 = scmp.eq.s32.totalorder %s21, 1
      %p60 = por %p58, %p59
      %p61 = scmp.ne.s32.totalorder %s52, %s53
      %p62 = scmp.eq.s32.totalorder %s21, 0
      %p63 = por %p61, %p62
      %p64 = scmp.ne.s32.totalorder %s52, %s53
      %p65 = scmp.eq.s32.totalorder %s22, 1
      %p66 = por %p64, %p65
      %p68 = scmp.ne.s32.totalorder %s53, %s67
      %p69 = scmp.eq.s32.totalorder %s22, 0
      %p70 = por %p68, %p69
      %s72 = sadd.s32 %s71, 1
      %p75 = scmp.eq.s32.totalorder %s16, 1
      %p76 = scmp.ne.s32.totalorder %s71, %s73
      %p77 = scmp.eq.s32.totalorder %s16, 0
      %p78 = por %p76, %p77
      %p79 = scmp.ne.s32.totalorder %s71, %s73
      %p80 = scmp.eq.s32.totalorder %s21, 1
      %p81 = por %p79, %p80
      %p82 = scmp.ne.s32.totalorder %s73, %s74
      %p83 = scmp.eq.s32.totalorder %s21, 0
      %p84 = por %p82, %p83
      %p85 = scmp.ne.s32.totalorder %s73, %s74
      %p86 = scmp.eq.s32.totalorder %s22, 1
      %p87 = por %p85, %p86
      %p89 = scmp.ne.s32.totalorder %s74, %s88
      %p90 = scmp.eq.s32.totalorder %s22, 0
      %p91 = por %p89, %p90
      %s92 = ssub.s32 %s16, %s23
      %p93 = scmp.eq.s32.totalorder %s92, 0
      %s95 = sadd.s32 %s94, 1
      %s96 = scalar_select %p93, %s94, %s95
      %p99 = pneg %p93
      %p100 = scmp.eq.s32.totalorder %s16, 1
      %p101 = por %p99, %p100
      %p102 = scmp.ne.s32.totalorder %s94, %s97
      %p103 = scmp.eq.s32.totalorder %s16, 0
      %p104 = por %p102, %p103
      %p105 = scmp.ne.s32.totalorder %s94, %s97
      %p106 = scmp.eq.s32.totalorder %s21, 1
      %p107 = por %p105, %p106
      %p108 = scmp.ne.s32.totalorder %s97, %s98
      %p109 = scmp.eq.s32.totalorder %s21, 0
      %p110 = por %p108, %p109
      %p111 = scmp.ne.s32.totalorder %s97, %s98
      %p112 = scmp.eq.s32.totalorder %s22, 1
      %p113 = por %p111, %p112
      %p115 = scmp.ne.s32.totalorder %s98, %s114
      %p116 = scmp.eq.s32.totalorder %s22, 0
      %p117 = por %p115, %p116
      %p118 = scmp.le.s32.totalorder 1, %s16
      %p119 = scmp.lt.s32.totalorder %s16, 3
      %p120 = pnand %p118, %p119
      %p121 = pneg %p120
      // Predicated region
      $region9: #{tpu_custom_call.1} parent=5 // pred_check
        _
      $region10: #{tpu_custom_call.1} parent=5 // pred_check_branch
        %123 = sbr.rel (%p120) target = $region12
      $region11: #{tpu_custom_call.1} parent=5 // pred_region
        %s124 = ssub.s32 %s16, 1
        // Predicated region
        $region13: #{tpu_custom_call.1} parent=11 // pred_check
          %p125 = pneg %p63
        $region14: #{tpu_custom_call.1} parent=11 // pred_check_branch
          %127 = sbr.rel (%p125) target = $region16
        $region15: #{tpu_custom_call.1} parent=11 // pred_region
          %129 = vsyncadd [#allocation6], 0
          %s130 = sshll.u32 %s1, 4
          %s131 = int_to_ptr.hbm [resolvable:$true] %s130
          %s132 = sshll.u32 [#allocation5], 4
          %s133 = int_to_ptr.vmem [resolvable:$true] %s132
          %138 = dma.hbm_to_vmem [thread:$0]  %s131, 1024, %s133, [#allocation6], 64, 64, 4
        $region16: #{tpu_custom_call.1} parent=11 // pred_fallthru
          _
        // Predicated region
        $region17: #{tpu_custom_call.1} parent=11 // pred_check
          %p139 = pneg %p84
        $region18: #{tpu_custom_call.1} parent=11 // pred_check_branch
          %141 = sbr.rel (%p139) target = $region20
        $region19: #{tpu_custom_call.1} parent=11 // pred_region
          _
        $region20: #{tpu_custom_call.1} parent=11 // pred_fallthru
          _
      $region12: #{tpu_custom_call.1} parent=5 // pred_fallthru
        _
      %p142 = scmp.lt.s32.totalorder %s16, 2
      // Predicated region
      $region21: #{tpu_custom_call.1} parent=5 // pred_check
        %p143 = pneg %p142
      $region22: #{tpu_custom_call.1} parent=5 // pred_check_branch
        %145 = sbr.rel (%p143) target = $region24
      $region23: #{tpu_custom_call.1} parent=5 // pred_region
        // Predicated region
        $region25: #{tpu_custom_call.1} parent=23 // pred_check
          %p146 = pneg %p36
        $region26: #{tpu_custom_call.1} parent=23 // pred_check_branch
          %148 = sbr.rel (%p146) target = $region28
        $region27: #{tpu_custom_call.1} parent=23 // pred_region
          %s149 = sand.u32 %s26, 1
          %s150 = scalar_lea.sflag [#allocation3], %s149
          %s151 = sand.u32 %s26, 1
          %s152 = smul.addr %s151, 32
          %s153 = scalar_lea.vmem [#allocation2], %s152
          %s154 = smul.u32 4, %s16
          %156 = vsyncadd %s150, 0
          %s157 = smul.addr %s154, 8
          %s158 = scalar_lea.hbm %s0, %s157
          %s159 = sshll.u32 %s158, 4
          %s160 = int_to_ptr.hbm [resolvable:$true] %s159
          %s161 = sshll.u32 %s153, 4
          %s162 = int_to_ptr.vmem [resolvable:$true] %s161
          %167 = dma.hbm_to_vmem [thread:$0]  %s160, 512, %s162, %s150, 128, 128, 8
        $region28: #{tpu_custom_call.1} parent=23 // pred_fallthru
          _
      $region24: #{tpu_custom_call.1} parent=5 // pred_fallthru
        _
      %p168 = scmp.le.s32.totalorder 1, %s16
      %p169 = scmp.lt.s32.totalorder %s16, 3
      %p170 = pnand %p168, %p169
      %p171 = pneg %p170
      // Predicated region
      $region29: #{tpu_custom_call.1} parent=5 // pred_check
        _
      $region30: #{tpu_custom_call.1} parent=5 // pred_check_branch
        %173 = sbr.rel (%p170) target = $region32
      $region31: #{tpu_custom_call.1} parent=5 // pred_region
        %s174 = ssub.s32 %s16, 1
        %s175 = sand.u32 %s29, 1
        %s176 = scalar_lea.sflag [#allocation3], %s175
        %s177 = sand.u32 %s29, 1
        %s178 = smul.addr %s177, 32
        %s179 = scalar_lea.vmem [#allocation2], %s178
        // Predicated region
        $region33: #{tpu_custom_call.1} parent=31 // pred_check
          %p180 = pneg %p42
        $region34: #{tpu_custom_call.1} parent=31 // pred_check_branch
          %182 = sbr.rel (%p180) target = $region36
        $region35: #{tpu_custom_call.1} parent=31 // pred_region
          %184 = dma.done %s176, 512
        $region36: #{tpu_custom_call.1} parent=31 // pred_fallthru
          _
        // Predicated region
        $region37: #{tpu_custom_call.1} parent=31 // pred_check
          %p185 = pneg %p63
        $region38: #{tpu_custom_call.1} parent=31 // pred_check_branch
          %187 = sbr.rel (%p185) target = $region40
        $region39: #{tpu_custom_call.1} parent=31 // pred_region
          %189 = dma.done [#allocation6], 1024
        $region40: #{tpu_custom_call.1} parent=31 // pred_fallthru
          _
        %s190 = sand.u32 %s29, 1
        %s191 = scalar_lea.sflag [#allocation3], %s190
        %s192 = sand.u32 %s29, 1
        %s193 = smul.addr %s192, 32
        %s194 = scalar_lea.vmem [#allocation2], %s193
        %p195 = pneg %p42
        %p196 = pneg %p39
        %p197 = pneg %p63
        %p198 = pneg %p60
        %p199 = pneg %p84
        %p200 = pneg %p81
        %p201 = pneg %p110
        %p202 = pneg %p107
        %s203 = sand.u32 %s97, 1
        %s204 = scalar_lea.sflag [#allocation4], %s203
        %s205 = sand.u32 %s97, 1
        %s206 = smul.addr %s205, 32
        %s207 = scalar_lea.vmem [#allocation7], %s206
        %s208 = smul.u32 4, %s21
        %s209 = smul.u32 4, %s21
        %v210 = vld [vmem:[%s179] sm:$0xff]
        %v211 = vld [vmem:[%s179 + $0x8] sm:$0xff]
        %v212 = vld [vmem:[%s179 + $0x10] sm:$0xff]
        %v213 = vld [vmem:[%s179 + $0x18] sm:$0xff]
        %v214 = vpack.c.bf16 %v211, %v210
        %v215 = vpack.c.bf16 %v213, %v212
        %v216 = vld [vmem:[#allocation5] sm:$0xf]
        %v217 = vld [vmem:[#allocation5 + $0x4] sm:$0xf]
        %v218 = vld [vmem:[#allocation5 + $0x8] sm:$0xf]
        %v219 = vld [vmem:[#allocation5 + $0xc] sm:$0xf]
        %v220 = vld [vmem:[#allocation5 + $0x10] sm:$0xf]
        %v221 = vld [vmem:[#allocation5 + $0x14] sm:$0xf]
        %v222 = vld [vmem:[#allocation5 + $0x18] sm:$0xf]
        %v223 = vld [vmem:[#allocation5 + $0x1c] sm:$0xf]
        %v224 = vld [vmem:[#allocation5 + $0x20] sm:$0xf]
        %v225 = vld [vmem:[#allocation5 + $0x24] sm:$0xf]
        %v226 = vld [vmem:[#allocation5 + $0x28] sm:$0xf]
        %v227 = vld [vmem:[#allocation5 + $0x2c] sm:$0xf]
        %v228 = vld [vmem:[#allocation5 + $0x30] sm:$0xf]
        %v229 = vld [vmem:[#allocation5 + $0x34] sm:$0xf]
        %v230 = vld [vmem:[#allocation5 + $0x38] sm:$0xf]
        %v231 = vld [vmem:[#allocation5 + $0x3c] sm:$0xf]
        %v232 = vld [vmem:[%s2] sm:$0x1]
        %v234 = vperm.slane %v232, 0
        %v252 = vunpack.c.l.b16 %v216
        %v253 = vunpack.c.l.b16 %v217
        %v254 = vunpack.c.l.b16 %v218
        %v255 = vunpack.c.l.b16 %v219
        %v256 = vunpack.c.l.b16 %v220
        %v257 = vunpack.c.l.b16 %v221
        %v258 = vunpack.c.l.b16 %v222
        %v259 = vunpack.c.l.b16 %v223
        %v260 = vunpack.c.l.b16 %v224
        %v261 = vunpack.c.l.b16 %v225
        %v262 = vunpack.c.l.b16 %v226
        %v263 = vunpack.c.l.b16 %v227
        %v264 = vunpack.c.l.b16 %v228
        %v265 = vunpack.c.l.b16 %v229
        %v266 = vunpack.c.l.b16 %v230
        %v267 = vunpack.c.l.b16 %v231
        %v268 = vpack.c.b16 %v253, %v252
        %v269 = vpack.c.b16 %v255, %v254
        %v270 = vpack.c.b16 %v257, %v256
        %v271 = vpack.c.b16 %v259, %v258
        %v272 = vpack.c.b16 %v261, %v260
        %v273 = vpack.c.b16 %v263, %v262
        %v274 = vpack.c.b16 %v265, %v264
        %v275 = vpack.c.b16 %v267, %v266
        %284 = vmatpush.bf16.msra.mxu0 %v275
        %285 = vmatpush.bf16.msra.mxu0 %v274
        %286 = vmatpush.bf16.msra.mxu0 %v273
        %287 = vmatpush.bf16.msra.mxu0 %v272
        %288 = vmatpush.bf16.msra.mxu0 %v271
        %289 = vmatpush.bf16.msra.mxu0 %v270
        %290 = vmatpush.bf16.msra.mxu0 %v269
        %291 = vmatpush.bf16.msra.mxu0 %v268
        %292 = vmatmul.bf16.gmra.mxu0 %v214
        %v293 = vpop.f32.mrf.mxu0
        %v294 = vadd.f32 %v234, %v293
        %v295 = vpop.f32.mrf.mxu0
        %v296 = vadd.f32 %v234, %v295
        %297 = vmatmul.bf16.gmra.mxu0 %v215
        %v298 = vpop.f32.mrf.mxu0
        %v299 = vadd.f32 %v234, %v298
        %v300 = vpop.f32.mrf.mxu0
        %v301 = vadd.f32 %v234, %v300
        %302 = vdwg.mxu0
        %v303 = vmax.f32 %v294, 0.0
        %v304 = vmax.f32 %v296, 0.0
        %v305 = vmax.f32 %v299, 0.0
        %v306 = vmax.f32 %v301, 0.0
        %v307 = vadd.f32 %v210, %v303
        %v308 = vadd.f32 %v211, %v304
        %v309 = vadd.f32 %v212, %v305
        %v310 = vadd.f32 %v213, %v306
        %311 = vst [vmem:[%s207] sm:$0xff] %v307
        %312 = vst [vmem:[%s207 + $0x8] sm:$0xff] %v308
        %313 = vst [vmem:[%s207 + $0x10] sm:$0xff] %v309
        %314 = vst [vmem:[%s207 + $0x18] sm:$0xff] %v310
        %s315 = sand.u32 %s97, 1
        %s316 = scalar_lea.sflag [#allocation4], %s315
        %s317 = sand.u32 %s97, 1
        %s318 = smul.addr %s317, 32
        %s319 = scalar_lea.vmem [#allocation7], %s318
        // Predicated region
        $region41: #{tpu_custom_call.1} parent=31 // pred_check
          %p320 = pneg %p107
        $region42: #{tpu_custom_call.1} parent=31 // pred_check_branch
          %322 = sbr.rel (%p320) target = $region44
        $region43: #{tpu_custom_call.1} parent=31 // pred_region
          %s323 = smul.u32 4, %s21
          %325 = vsyncadd %s316, 0
          %s326 = smul.addr %s323, 8
          %s327 = scalar_lea.hbm %s3, %s326
          %s328 = sshll.u32 %s319, 4
          %s329 = int_to_ptr.vmem [resolvable:$true] %s328
          %s330 = sshll.u32 %s327, 4
          %s331 = int_to_ptr.hbm [resolvable:$true] %s330
          %336 = dma.vmem_to_hbm [thread:$0]  %s329, 512, %s331, %s316, 128, 128, 8
        $region44: #{tpu_custom_call.1} parent=31 // pred_fallthru
          _
      $region32: #{tpu_custom_call.1} parent=5 // pred_fallthru
        _
      %p337 = scmp.le.s32.totalorder 2, %s16
      // Predicated region
      $region45: #{tpu_custom_call.1} parent=5 // pred_check
        %p338 = pneg %p337
      $region46: #{tpu_custom_call.1} parent=5 // pred_check_branch
        %340 = sbr.rel (%p338) target = $region48
      $region47: #{tpu_custom_call.1} parent=5 // pred_region
        %s341 = ssub.s32 %s16, 2
        // Predicated region
        $region49: #{tpu_custom_call.1} parent=47 // pred_check
          %p342 = pneg %p113
        $region50: #{tpu_custom_call.1} parent=47 // pred_check_branch
          %344 = sbr.rel (%p342) target = $region52
        $region51: #{tpu_custom_call.1} parent=47 // pred_region
          %s345 = sand.u32 %s98, 1
          %s346 = scalar_lea.sflag [#allocation4], %s345
          %s347 = sand.u32 %s98, 1
          %s348 = smul.addr %s347, 32
          %s349 = scalar_lea.vmem [#allocation7], %s348
          %351 = dma.done %s346, 512
        $region52: #{tpu_custom_call.1} parent=47 // pred_fallthru
          _
      $region48: #{tpu_custom_call.1} parent=5 // pred_fallthru
        _
    $region6: #{tpu_custom_call.1} parent=1 // loop_footer
      %s20 = sadd.s32 1, %s16
    $region7: #{tpu_custom_call.1} parent=1 // loop_footer_branch
      %15 = sbr.rel target = $region3
    $region8: #{tpu_custom_call.1} parent=1 // loop_exit
      _
    %352 = vsyncpa [#allocation3], 1
    %s353 = scalar_lea.sflag [#allocation3], 1
    %354 = vsyncpa %s353, 1
    %355 = vsyncpa [#allocation6], 1
    %356 = vsyncpa [#allocation4], 1
    %s357 = scalar_lea.sflag [#allocation4], 1
    %358 = vsyncpa %s357, 1

</llo_original>
